<compile_context>
chip_gen: v7x
topology: tpu7x:2x2x1
jax: 0.10.0
libtpu: 0.0.40
codegen_flags: <defaults>
</compile_context>

<pallas_src>
import math
import functools

import jax
import jax.numpy as jnp
from jax.experimental import pallas as pl
from jax.experimental.pallas import tpu as pltpu


def _ceil_to(x, m):
    return ((x + m - 1) // m) * m


def _tpu_budget():
    """(target input-tile bytes, vmem_limit cap) per TPU generation."""
    kind = ""
    try:
        kind = jax.devices()[0].device_kind.lower()
    except Exception:
        pass
    if "v7" in kind:
        return 14 << 20, 56 << 20     # 2 buffers + scratch < 64 MiB physical VMEM
    if "v6" in kind:
        return 24 << 20, 100 << 20    # 128 MiB physical VMEM, ~1.4 TB/s
    if "v5e" in kind or "v5 lite" in kind or "v5lite" in kind:
        return 8 << 20, 96 << 20      # ~0.82 TB/s: 8 MiB already hides step overhead
    if "v5" in kind or "v4" in kind:
        return 16 << 20, 96 << 20
    return 8 << 20, 48 << 20          # unknown chip: stay conservative


def _choose_tiles(M, N, L, itemsize, target_bytes):
    """Pick (tm, tl).  tl == L (single lag pass) whenever one (N, L) row fits."""
    sub = max(8, 32 // itemsize)              # sublane multiple: 8/16/32 for 4/2/1 B
    n_pad = _ceil_to(N, sub)
    l_pad = _ceil_to(L, 128)
    row_bytes = n_pad * l_pad * itemsize      # layout-padded bytes of one (1, N, L) slab

    if row_bytes <= target_bytes:
        tm = max(1, min(M, target_bytes // row_bytes))
        if M > 1 and tm >= M:
            tm = pl.cdiv(M, 2)                # >= 2 blocks on the "parallel" axis (v7x megacore)
        if tm >= 256:
            tm = (tm // 128) * 128            # lane-dense output store
        elif tm >= 16:
            tm = (tm // 8) * 8
        return int(tm), int(L)

    # One row does not fit: split the lag axis and carry a running max.
    tl = (target_bytes // (n_pad * itemsize)) // 128 * 128
    tl = max(128, min(int(tl), l_pad))
    # TODO(synk): if N alone is so large that a (1, N, 128) tile still overflows
    # VMEM, a third grid axis over N (carrying a running partial channel sum)
    # would be needed.
    return 1, int(tl)


def _kernel_single(thr_ref, x_ref, o_ref):
    """Whole lag axis in one block: no scratch, no cross-step carry."""
    x = x_ref[...]
    if not (x.dtype == jnp.float32 or x.dtype == jnp.bfloat16):
        x = x.astype(jnp.float32)
    q = jnp.max(jnp.abs(x), axis=-1).astype(jnp.float32)        # (tm, N)
    q = jnp.where(q > thr_ref[0], q, jnp.float32(0.0))          # threshold gate
    o_ref[0, 0, :] = jnp.sum(q, axis=-1).astype(o_ref.dtype)    # sum over channels


def _kernel_multi(thr_ref, x_ref, o_ref, qmax_ref, *, tl, l_valid, needs_mask):
    """Lag axis split across grid axis 1: running max in a (tm, N, 1) scratch."""
    k = pl.program_id(1)

    @pl.when(k == 0)
    def _():
        qmax_ref[...] = jnp.zeros_like(qmax_ref)   # |x| >= 0 -> 0 is a valid identity

    x = x_ref[...]
    if not (x.dtype == jnp.float32 or x.dtype == jnp.bfloat16):
        x = x.astype(jnp.float32)
    a = jnp.abs(x)
    if needs_mask:  # static flag: only when L % tl != 0 (mask the ragged lag edge)
        lag = jax.lax.broadcasted_iota(jnp.int32, a.shape, a.ndim - 1) + k * tl
        a = jnp.where(lag < l_valid, a, jnp.zeros_like(a))
    part = jnp.max(a, axis=-1, keepdims=True).astype(jnp.float32)   # (tm, N, 1)
    qmax_ref[...] = jnp.maximum(qmax_ref[...], part)

    @pl.when(k == pl.num_programs(1) - 1)
    def _():
        q3 = qmax_ref[...]                              # (tm, N, 1)
        q = q3.reshape(q3.shape[0], q3.shape[1])        # (tm, N) -- once per block
        q = jnp.where(q > thr_ref[0], q, jnp.float32(0.0))
        o_ref[0, 0, :] = jnp.sum(q, axis=-1).astype(o_ref.dtype)


def reduction_reduce_x(xcorr, threshold=0.5, *, tile_m=None, tile_l=None):
    """cc_sum = sum_N( max_L(|xcorr|) * (max_L(|xcorr|) > threshold) )."""
    *lead, N, L = xcorr.shape
    M = int(math.prod(lead)) if lead else 1
    x = xcorr.reshape(M, N, L)
    itemsize = x.dtype.itemsize

    target_bytes, vmem_cap = _tpu_budget()
    tm, tl = _choose_tiles(M, N, L, itemsize, target_bytes)
    if tile_m is not None:
        tm = max(1, min(int(tile_m), M))
    if tile_l is not None:
        tl = max(1, int(tile_l))
        tl = L if tl >= L else _ceil_to(tl, 128)   # keep the 128-lane block rule

    gm = pl.cdiv(M, tm)
    gl = pl.cdiv(L, tl)
    multi_lag = gl > 1
    needs_mask = multi_lag and (L % tl != 0)

    thr = jnp.asarray([threshold], dtype=jnp.float32)

    # VMEM footprint with layout padding (sublane multiple per dtype, 128 lanes).
    sub = max(8, 32 // itemsize)
    in_tile = tm * _ceil_to(N, sub) * _ceil_to(tl, 128) * itemsize
    out_tile = 8 * _ceil_to(tm, 128) * itemsize
    scratch_bytes = tm * _ceil_to(N, 8) * 128 * 4 if multi_lag else 0
    footprint = 2 * in_tile + 2 * out_tile + scratch_bytes
    vmem_limit = int(min(vmem_cap, max(footprint + (4 << 20), 32 << 20)))

    if multi_lag:
        kernel = functools.partial(_kernel_multi, tl=tl, l_valid=L, needs_mask=needs_mask)
        scratch_shapes = [pltpu.VMEM((tm, N, 1), jnp.float32)]
    else:
        kernel = _kernel_single
        scratch_shapes = []

    cost = pl.CostEstimate(
        flops=2 * M * N * L,
        transcendentals=0,
        bytes_accessed=M * N * L * itemsize + M * itemsize,
    )

    out = pl.pallas_call(
        kernel,
        out_shape=jax.ShapeDtypeStruct((gm, 1, tm), xcorr.dtype),
        grid=(gm, gl),
        in_specs=[
            pl.BlockSpec(memory_space=pltpu.MemorySpace.SMEM),       # threshold scalar
            pl.BlockSpec((tm, N, tl), lambda i, k: (i, 0, k)),       # streamed input tile
        ],
        out_specs=pl.BlockSpec((1, 1, tm), lambda i, k: (i, 0, 0)),
        scratch_shapes=scratch_shapes,
        compiler_params=pltpu.CompilerParams(
            dimension_semantics=("parallel", "arbitrary"),
            vmem_limit_bytes=vmem_limit,
        ),
        cost_estimate=cost,
    )(thr, x)

    cc_sum = out.reshape(gm * tm)[:M]
    return cc_sum.reshape(tuple(lead)) if lead else cc_sum.reshape(())


class Reduction:
    """JAX/Pallas counterpart of the PyTorch Reduction module."""

    def __init__(self, mode='reduce_x', threshold=0.5):
        self.mode = mode
        self.threshold = threshold

    def __call__(self, meta):
        if self.mode == 'reduce_x':
            meta = dict(meta)
            meta['cc_sum'] = reduction_reduce_x(meta['xcorr'], self.threshold)
        else:
            raise NotImplementedError
        return meta


def _reference_reduce_x(xcorr, threshold=0.5):
    q = jnp.max(jnp.abs(xcorr), axis=-1)
    q = q * (q > threshold).astype(q.dtype)
    return jnp.sum(q, axis=-1)


if __name__ == "__main__":
    key = jax.random.PRNGKey(0)
    k1, k2, k3 = jax.random.split(key, 3)

    # Test 1: auto tiling, single lag pass — batch=2, events=4, channels=16, lags=128.
    x1 = jax.random.normal(k1, (2, 4, 16, 128), dtype=jnp.float32)
    module = Reduction(mode='reduce_x', threshold=0.5)
    out1 = jax.block_until_ready(module({"xcorr": x1})['cc_sum'])
    ref1 = _reference_reduce_x(x1, 0.5)
    assert out1.shape == ref1.shape, (out1.shape, ref1.shape)
    assert jnp.allclose(out1, ref1, rtol=1e-5, atol=1e-5)

    # Test 2: forced small tiles — exercises partial M blocks, partial (masked) L
    # blocks and the multi-step running-max reduction over the lag axis.
    x2 = jax.random.normal(k2, (2, 3, 5, 160), dtype=jnp.float32)
    out2 = jax.block_until_ready(
        reduction_reduce_x(x2, threshold=0.5, tile_m=4, tile_l=128))
    ref2 = _reference_reduce_x(x2, 0.5)
    assert out2.shape == ref2.shape, (out2.shape, ref2.shape)
    assert jnp.allclose(out2, ref2, rtol=1e-5, atol=1e-5)

    # Test 3: bf16 input — native bf16 abs/max path, f32 accumulation for the sum.
    x3 = jax.random.normal(k3, (2, 4, 16, 128), dtype=jnp.bfloat16)
    out3 = jax.block_until_ready(reduction_reduce_x(x3, threshold=0.5))
    ref3 = _reference_reduce_x(x3, 0.5)
    assert out3.shape == ref3.shape, (out3.shape, ref3.shape)
    assert jnp.allclose(out3.astype(jnp.float32), ref3.astype(jnp.float32),
                        rtol=5e-2, atol=0.5)

    print("KERNEL_OK")
</pallas_src>

<mosaic_0001>
module attributes {stable_mosaic.version = 11 : i64} {
  func.func @_kernel_single(%arg0: i32, %arg1: i32, %arg2: memref<1xf32, #tpu.memory_space<smem>>, %arg3: memref<4x16x128xf32, #tpu.memory_space<vmem>>, %arg4: memref<1x1x4xf32, #tpu.memory_space<vmem>>) attributes {dimension_semantics = [#tpu.dimension_semantics<parallel>, #tpu.dimension_semantics<arbitrary>], iteration_bounds = array<i64: 2, 1>, scalar_prefetch = 0 : i64, scratch_operands = 0 : i64, tpu.core_type = #tpu.core_type<tc>, window_params = [{transform_indices = @transform_0, window_bounds = array<i64: 1>}, {transform_indices = @transform_1, window_bounds = array<i64: 4, 16, 128>}, {transform_indices = @transform_2, window_bounds = array<i64: 1, 1, 4>}]} {
    %c0 = arith.constant 0 : index
    %c0_0 = arith.constant 0 : index
    %c0_1 = arith.constant 0 : index
    %0 = vector.load %arg3[%c0, %c0_0, %c0_1] : memref<4x16x128xf32, #tpu.memory_space<vmem>>, vector<4x16x128xf32>
    %1 = math.absf %0 : vector<4x16x128xf32>
    %cst = arith.constant dense<0xFF800000> : vector<4x16xf32>
    %2 = vector.multi_reduction <maximumf>, %1, %cst [2] : vector<4x16x128xf32> to vector<4x16xf32>
    %c0_2 = arith.constant 0 : index
    %3 = memref.load %arg2[%c0_2] : memref<1xf32, #tpu.memory_space<smem>>
    %4 = vector.broadcast %3 : f32 to vector<4x16xf32>
    %5 = arith.cmpf ogt, %2, %4 : vector<4x16xf32>
    %cst_3 = arith.constant 0.000000e+00 : f32
    %6 = vector.broadcast %cst_3 : f32 to vector<4x16xf32>
    %7 = arith.select %5, %2, %6 : vector<4x16xi1>, vector<4x16xf32>
    %cst_4 = arith.constant dense<0.000000e+00> : vector<4xf32>
    %8 = vector.multi_reduction <add>, %7, %cst_4 [1] : vector<4x16xf32> to vector<4xf32>
    %c0_5 = arith.constant 0 : index
    %c0_6 = arith.constant 0 : index
    %c0_7 = arith.constant 0 : index
    %9 = vector.load %arg4[%c0_5, %c0_6, %c0_7] : memref<1x1x4xf32, #tpu.memory_space<vmem>>, vector<1x1x4xf32>
    %10 = vector.shape_cast %9 : vector<1x1x4xf32> to vector<4xf32>
    %11 = vector.shape_cast %8 : vector<4xf32> to vector<1x1x4xf32>
    tpu.vector_store %arg4[%c0_5, %c0_6, %c0_7], %11 {strides = array<i32>} : memref<1x1x4xf32, #tpu.memory_space<vmem>>, vector<1x1x4xf32>,
    return
  }
  func.func @transform_0(%arg0: i32, %arg1: i32) -> i32 {
    %c0_i32 = arith.constant 0 : i32
    %c0_i32_0 = arith.constant 0 : i32
    return %c0_i32 : i32
  }
  func.func @transform_1(%arg0: i32, %arg1: i32) -> (i32, i32, i32) {
    %c0_i32 = arith.constant 0 : i32
    %c0_i32_0 = arith.constant 0 : i32
    return %arg0, %c0_i32, %arg1 : i32, i32, i32
  }
  func.func @transform_2(%arg0: i32, %arg1: i32) -> (i32, i32, i32) {
    %c0_i32 = arith.constant 0 : i32
    %c0_i32_0 = arith.constant 0 : i32
    %c0_i32_1 = arith.constant 0 : i32
    return %arg0, %c0_i32, %c0_i32_0 : i32, i32, i32
  }
}

</mosaic_0001>

<llo_original>
// kernel: tpu_custom_call.1
$region0: #{tpu_custom_call.1}
  #allocation0 [shape = 'u32[]', space=smem, size = 0x4, offset = 0x4, fixed_abs, tag = 'smem constant byte address 0x4 - core index']
  #allocation1 [shape = 'u32[144,128]{1,0:T(1,128)}', space=vmem, size = 0x12000, scoped, tag = 'internal scratch']
  #allocation2 [shape = 'f32[1]{0:T(128)S(6)}', space=smem, size = 0x200, scoped, tag = 'scoped memory for tpu_custom_call.1']
  %s0 = inlined_call_operand.<no memory space> [shape: f32[1], index: 0, kind: input, shape index: {}]
  %s1 = inlined_call_operand.hbm [shape: f32[8,16,128], index: 1, kind: input, shape index: {}]
  %s2 = inlined_call_operand.hbm [shape: f32[2,1,4], index: 2, kind: output, shape index: {}]
  %s3 = sld [smem:[#allocation0]]
  $region45: #{tpu_custom_call.1} parent=0
    _
  %s5 = ssub.s32 1, %s3
  %s6 = scalar_select 0, %s5, %s3
  %7 = sst [smem:[#allocation2]] %s0
  $region1: #{tpu_custom_call.1} parent=0
    #allocation3 [shape = 'u8[65536]{0}', space=vmem, size = 0x10000, scoped, tag = 'input window, operand 1']
    #allocation4 [shape = 's32[2]{0}', space=sflag, size = 0x8, scoped, tag = 'scoped memory for tpu_custom_call.1']
    #allocation5 [shape = 's32[2]{0}', space=sflag, size = 0x8, scoped, tag = 'scoped memory for tpu_custom_call.1']
    #allocation6 [shape = 'u8[1024]{0}', space=vmem, size = 0x400, scoped, tag = 'output window, operand 0']
    %8 = vsyncpa [#allocation4], 0
    %s9 = scalar_lea.sflag [#allocation4], 1
    %10 = vsyncpa %s9, 0
    %11 = vsyncpa [#allocation5], 0
    %s12 = scalar_lea.sflag [#allocation5], 1
    %13 = vsyncpa %s12, 0
    loop: start=0, step=1, limit=4
    $region2: #{tpu_custom_call.1} parent=1 // loop_pre_header
      _
    $region3: #{tpu_custom_call.1} parent=1 // loop_header
      %s15 = sphi 0, %s19
      %p16 = scmp.ge.s32.totalorder %s15, 4
      %s22 = sphi 0, %s34
      %s23 = sphi 0, %s30
      %s24 = sphi 0, %s22
      %s25 = sphi 0, %s23
      %s26 = sphi 0, %s24
      %s27 = sphi 0, %s25
      %s35 = sphi 0, %s35
      %s37 = sphi 0, %s35
      %s38 = sphi 0, %s37
      %s52 = sphi 0, %s38
      %s60 = sphi 0, %s62
      %s63 = sphi 0, %s60
      %s64 = sphi 0, %s63
      %s80 = sphi 0, %s64
      %s86 = sphi 0, %s88
      %s89 = sphi 0, %s86
      %s90 = sphi 0, %s89
      %s106 = sphi 0, %s90
    $region4: #{tpu_custom_call.1} parent=1 // loop_header_branch
      %18 = sbr.rel (%p16) target = $region8
    $region5: #{tpu_custom_call.1} parent=1 // loop_body
      %s20 = ssub.s32 %s15, 1
      %s21 = ssub.s32 %s15, 2
      %s28 = sadd.s32 1, %s23
      %p29 = scmp.ge.s32.totalorder %s28, 1
      %s30 = scalar_select %p29, 0, %s28
      %s31 = sadd.s32 1, %s22
      %s32 = scalar_select %p29, %s31, %s22
      %p33 = scmp.ge.s32.totalorder %s32, 2
      %s34 = scalar_select %p33, 0, %s32
      %s36 = sadd.s32 %s35, 1
      %p39 = scmp.eq.s32.totalorder %s15, 1
      %p40 = scmp.ne.s32.totalorder %s35, %s37
      %p41 = scmp.eq.s32.totalorder %s15, 0
      %p42 = por %p40, %p41
      %p43 = scmp.ne.s32.totalorder %s35, %s37
      %p44 = scmp.eq.s32.totalorder %s20, 1
      %p45 = por %p43, %p44
      %p46 = scmp.ne.s32.totalorder %s37, %s38
      %p47 = scmp.eq.s32.totalorder %s20, 0
      %p48 = por %p46, %p47
      %p49 = scmp.ne.s32.totalorder %s37, %s38
      %p50 = scmp.eq.s32.totalorder %s21, 1
      %p51 = por %p49, %p50
      %p53 = scmp.ne.s32.totalorder %s38, %s52
      %p54 = scmp.eq.s32.totalorder %s21, 0
      %p55 = por %p53, %p54
      %s56 = ssub.s32 %s22, %s34
      %s57 = ssub.s32 %s23, %s30
      %s58 = sor.u32 %s56, %s57
      %p59 = scmp.eq.s32.totalorder %s58, 0
      %s61 = sadd.s32 %s60, 1
      %s62 = scalar_select %p59, %s60, %s61
      %p65 = pneg %p59
      %p66 = scmp.eq.s32.totalorder %s15, 1
      %p67 = por %p65, %p66
      %p68 = scmp.ne.s32.totalorder %s60, %s63
      %p69 = scmp.eq.s32.totalorder %s15, 0
      %p70 = por %p68, %p69
      %p71 = scmp.ne.s32.totalorder %s60, %s63
      %p72 = scmp.eq.s32.totalorder %s20, 1
      %p73 = por %p71, %p72
      %p74 = scmp.ne.s32.totalorder %s63, %s64
      %p75 = scmp.eq.s32.totalorder %s20, 0
      %p76 = por %p74, %p75
      %p77 = scmp.ne.s32.totalorder %s63, %s64
      %p78 = scmp.eq.s32.totalorder %s21, 1
      %p79 = por %p77, %p78
      %p81 = scmp.ne.s32.totalorder %s64, %s80
      %p82 = scmp.eq.s32.totalorder %s21, 0
      %p83 = por %p81, %p82
      %s84 = ssub.s32 %s22, %s34
      %p85 = scmp.eq.s32.totalorder %s84, 0
      %s87 = sadd.s32 %s86, 1
      %s88 = scalar_select %p85, %s86, %s87
      %p91 = pneg %p85
      %p92 = scmp.eq.s32.totalorder %s15, 1
      %p93 = por %p91, %p92
      %p94 = scmp.ne.s32.totalorder %s86, %s89
      %p95 = scmp.eq.s32.totalorder %s15, 0
      %p96 = por %p94, %p95
      %p97 = scmp.ne.s32.totalorder %s86, %s89
      %p98 = scmp.eq.s32.totalorder %s20, 1
      %p99 = por %p97, %p98
      %p100 = scmp.ne.s32.totalorder %s89, %s90
      %p101 = scmp.eq.s32.totalorder %s20, 0
      %p102 = por %p100, %p101
      %p103 = scmp.ne.s32.totalorder %s89, %s90
      %p104 = scmp.eq.s32.totalorder %s21, 1
      %p105 = por %p103, %p104
      %p107 = scmp.ne.s32.totalorder %s90, %s106
      %p108 = scmp.eq.s32.totalorder %s21, 0
      %p109 = por %p107, %p108
      %p110 = scmp.le.s32.totalorder 1, %s15
      %p111 = scmp.lt.s32.totalorder %s15, 3
      %p112 = pnand %p110, %p111
      %p113 = pneg %p112
      // Predicated region
      $region9: #{tpu_custom_call.1} parent=5 // pred_check
        _
      $region10: #{tpu_custom_call.1} parent=5 // pred_check_branch
        %115 = sbr.rel (%p112) target = $region12
      $region11: #{tpu_custom_call.1} parent=5 // pred_region
        %s116 = ssub.s32 %s15, 1
        // Predicated region
        $region13: #{tpu_custom_call.1} parent=11 // pred_check
          %p117 = pneg %p48
        $region14: #{tpu_custom_call.1} parent=11 // pred_check_branch
          %119 = sbr.rel (%p117) target = $region16
        $region15: #{tpu_custom_call.1} parent=11 // pred_region
          _
        $region16: #{tpu_custom_call.1} parent=11 // pred_fallthru
          _
      $region12: #{tpu_custom_call.1} parent=5 // pred_fallthru
        _
      %p120 = scmp.lt.s32.totalorder %s15, 2
      // Predicated region
      $region17: #{tpu_custom_call.1} parent=5 // pred_check
        %p121 = pneg %p120
      $region18: #{tpu_custom_call.1} parent=5 // pred_check_branch
        %123 = sbr.rel (%p121) target = $region20
      $region19: #{tpu_custom_call.1} parent=5 // pred_region
        // Predicated region
        $region21: #{tpu_custom_call.1} parent=19 // pred_check
          %p124 = pneg %p70
        $region22: #{tpu_custom_call.1} parent=19 // pred_check_branch
          %126 = sbr.rel (%p124) target = $region24
        $region23: #{tpu_custom_call.1} parent=19 // pred_region
          %s127 = sand.u32 %s60, 1
          %s128 = scalar_lea.sflag [#allocation4], %s127
          %s129 = sand.u32 %s60, 1
          %s130 = smul.addr %s129, 64
          %s131 = scalar_lea.vmem [#allocation3], %s130
          %s132 = smul.u32 4, %s22
          %s134 = ssub.s32 1024, 1024
          %135 = vsyncadd %s128, %s134
          %s136 = smul.addr %s132, 2
          %s137 = sadd.s32 %s23, %s136
          %s138 = smul.addr %s137, 128
          %s139 = scalar_lea.hbm %s1, %s138
          %s140 = sshll.u32 %s131, 4
          %s141 = int_to_ptr.vmem [resolvable:$true] %s140
          %146 = dma.hbm_to_vmem [thread:$0]  %s139, 1024, %s141, %s128, 128, 128, 8
        $region24: #{tpu_custom_call.1} parent=19 // pred_fallthru
          _
      $region20: #{tpu_custom_call.1} parent=5 // pred_fallthru
        _
      %p147 = scmp.le.s32.totalorder 1, %s15
      %p148 = scmp.lt.s32.totalorder %s15, 3
      %p149 = pnand %p147, %p148
      %p150 = pneg %p149
      // Predicated region
      $region25: #{tpu_custom_call.1} parent=5 // pred_check
        _
      $region26: #{tpu_custom_call.1} parent=5 // pred_check_branch
        %152 = sbr.rel (%p149) target = $region28
      $region27: #{tpu_custom_call.1} parent=5 // pred_region
        %s153 = ssub.s32 %s15, 1
        %s154 = sand.u32 %s63, 1
        %s155 = scalar_lea.sflag [#allocation4], %s154
        %s156 = sand.u32 %s63, 1
        %s157 = smul.addr %s156, 64
        %s158 = scalar_lea.vmem [#allocation3], %s157
        // Predicated region
        $region29: #{tpu_custom_call.1} parent=27 // pred_check
          %p159 = pneg %p76
        $region30: #{tpu_custom_call.1} parent=27 // pred_check_branch
          %161 = sbr.rel (%p159) target = $region32
        $region31: #{tpu_custom_call.1} parent=27 // pred_region
          %162 = dma.done %s155, 1024
        $region32: #{tpu_custom_call.1} parent=27 // pred_fallthru
          _
        %p163 = pneg %p48
        %p164 = pneg %p45
        %s165 = sand.u32 %s63, 1
        %s166 = scalar_lea.sflag [#allocation4], %s165
        %s167 = sand.u32 %s63, 1
        %s168 = smul.addr %s167, 64
        %s169 = scalar_lea.vmem [#allocation3], %s168
        %p170 = pneg %p76
        %p171 = pneg %p73
        %p172 = pneg %p102
        %p173 = pneg %p99
        %s174 = sand.u32 %s89, 1
        %s175 = scalar_lea.sflag [#allocation5], %s174
        %s176 = sand.u32 %s89, 1
        %s177 = scalar_lea.vmem [#allocation6], %s176
        %s178 = smul.u32 4, %s24
        %v179 = vld [vmem:[%s158] sm:$0xff]
        %v180 = vld [vmem:[%s158 + $0x8] sm:$0xff]
        %v181 = vld [vmem:[%s158 + $0x10] sm:$0xff]
        %v182 = vld [vmem:[%s158 + $0x18] sm:$0xff]
        %v183 = vld [vmem:[%s158 + $0x20] sm:$0xff]
        %v184 = vld [vmem:[%s158 + $0x28] sm:$0xff]
        %v185 = vld [vmem:[%s158 + $0x30] sm:$0xff]
        %v186 = vld [vmem:[%s158 + $0x38] sm:$0xff]
        %v187 = vand.u32 2147483647, %v179
        %v188 = vand.u32 2147483647, %v180
        %v189 = vand.u32 2147483647, %v181
        %v190 = vand.u32 2147483647, %v182
        %v191 = vand.u32 2147483647, %v183
        %v192 = vand.u32 2147483647, %v184
        %v193 = vand.u32 2147483647, %v185
        %v194 = vand.u32 2147483647, %v186
        %195 = vmax.xlane.f32.xlu0 %v187
        %v196 = vpop.xlane.xlu0 %195
        %197 = vmax.xlane.f32.xlu0 %v188
        %v198 = vpop.xlane.xlu0 %197
        %199 = vmax.xlane.f32.xlu0 %v189
        %v200 = vpop.xlane.xlu0 %199
        %201 = vmax.xlane.f32.xlu0 %v190
        %v202 = vpop.xlane.xlu0 %201
        %203 = vmax.xlane.f32.xlu0 %v191
        %v204 = vpop.xlane.xlu0 %203
        %205 = vmax.xlane.f32.xlu0 %v192
        %v206 = vpop.xlane.xlu0 %205
        %207 = vmax.xlane.f32.xlu0 %v193
        %v208 = vpop.xlane.xlu0 %207
        %209 = vmax.xlane.f32.xlu0 %v194
        %v210 = vpop.xlane.xlu0 %209
        %s211 = sld [smem:[#allocation2]]
        %v212 = vstv %s211
        %vm213 = vcmp.gt.f32.partialorder %v196, %v212
        %vm214 = vcmp.gt.f32.partialorder %v198, %v212
        %vm215 = vcmp.gt.f32.partialorder %v200, %v212
        %vm216 = vcmp.gt.f32.partialorder %v202, %v212
        %vm217 = vcmp.gt.f32.partialorder %v204, %v212
        %vm218 = vcmp.gt.f32.partialorder %v206, %v212
        %vm219 = vcmp.gt.f32.partialorder %v208, %v212
        %vm220 = vcmp.gt.f32.partialorder %v210, %v212
        %v221 = vsel %vm213, %v196, 0.0
        %v222 = vsel %vm214, %v198, 0.0
        %v223 = vsel %vm215, %v200, 0.0
        %v224 = vsel %vm216, %v202, 0.0
        %v225 = vsel %vm217, %v204, 0.0
        %v226 = vsel %vm218, %v206, 0.0
        %v227 = vsel %vm219, %v208, 0.0
        %v228 = vsel %vm220, %v210, 0.0
        %v237 = vlaneseq
        %v238 = vand.u32 %v237, 127
        %v239 = vlaneseq
        %v240 = vshrl.u32 %v239, 7
        %v241 = vsub.s32 %v238, %v240
        %v242 = vrot.slane %v221, %v241
        %v243 = vadd.s32 %v238, 4294967288
        %v244 = vlaneseq
        %v245 = vshrl.u32 %v244, 7
        %v246 = vsub.s32 %v243, %v245
        %v247 = vrot.slane %v222, %v246
        %vm248 = vcmask 130112
        %v249 = vsel %vm248, %v247, %v242
        %v250 = vlaneseq
        %v251 = vshrl.u32 %v250, 7
        %v252 = vsub.s32 %v238, %v251
        %v253 = vrot.slane %v223, %v252
        %v254 = vlaneseq
        %v255 = vshrl.u32 %v254, 7
        %v256 = vsub.s32 %v243, %v255
        %v257 = vrot.slane %v224, %v256
        %v258 = vsel %vm248, %v257, %v253
        %v259 = vlaneseq
        %v260 = vshrl.u32 %v259, 7
        %v261 = vsub.s32 %v238, %v260
        %v262 = vrot.slane %v225, %v261
        %v263 = vlaneseq
        %v264 = vshrl.u32 %v263, 7
        %v265 = vsub.s32 %v243, %v264
        %v266 = vrot.slane %v226, %v265
        %v267 = vsel %vm248, %v266, %v262
        %v268 = vlaneseq
        %v269 = vshrl.u32 %v268, 7
        %v270 = vsub.s32 %v238, %v269
        %v271 = vrot.slane %v227, %v270
        %v272 = vlaneseq
        %v273 = vshrl.u32 %v272, 7
        %v274 = vsub.s32 %v243, %v273
        %v275 = vrot.slane %v228, %v274
        %v276 = vsel %vm248, %v275, %v271
        %vm277 = vcmask 1041409
        %v278 = vsel %vm277, %v258, %v249
        %vm279 = vcmask 1042434
        %v280 = vsel %vm279, %v267, %v278
        %vm281 = vcmask 1043459
        %v282 = vsel %vm281, %v276, %v280
        %vm284 = vcmask 125952
        %v285 = vsel %vm284, %v282, 0.0
        %286 = vadd.xlane.f32.xlu0 %v285
        %v287 = vpop.xlane.xlu0 %286
        %v289 = vlaneseq
        %v290 = vshrl.u32 %v289, 7
        %v291 = vsub.s32 %v238, %v290
        %v292 = vrot.slane %v287, %v291
        %vm294 = vcmask 24576
        %295 = vst.msk [vmem:[%s177] sm:$0x1] %vm294, %v292
        %s296 = sand.u32 %s89, 1
        %s297 = scalar_lea.sflag [#allocation5], %s296
        %s298 = sand.u32 %s89, 1
        %s299 = scalar_lea.vmem [#allocation6], %s298
        // Predicated region
        $region33: #{tpu_custom_call.1} parent=27 // pred_check
          %p300 = pneg %p99
        $region34: #{tpu_custom_call.1} parent=27 // pred_check_branch
          %302 = sbr.rel (%p300) target = $region36
        $region35: #{tpu_custom_call.1} parent=27 // pred_region
          %s304 = ssub.s32 16, 16
          %305 = vsyncadd %s297, %s304
          %s306 = smul.addr %s24, 16
          %s307 = scalar_lea.hbm %s2, %s306
          %s309 = sshll.u32 %s299, 4
          %s310 = int_to_ptr.vmem [resolvable:$true] %s309
          %312 = dma.vmem_to_hbm [thread:$0]  %s310, 16, %s307, %s297
        $region36: #{tpu_custom_call.1} parent=27 // pred_fallthru
          _
      $region28: #{tpu_custom_call.1} parent=5 // pred_fallthru
        _
      %p313 = scmp.le.s32.totalorder 2, %s15
      // Predicated region
      $region37: #{tpu_custom_call.1} parent=5 // pred_check
        %p314 = pneg %p313
      $region38: #{tpu_custom_call.1} parent=5 // pred_check_branch
        %316 = sbr.rel (%p314) target = $region40
      $region39: #{tpu_custom_call.1} parent=5 // pred_region
        %s317 = ssub.s32 %s15, 2
        // Predicated region
        $region41: #{tpu_custom_call.1} parent=39 // pred_check
          %p318 = pneg %p105
        $region42: #{tpu_custom_call.1} parent=39 // pred_check_branch
          %320 = sbr.rel (%p318) target = $region44
        $region43: #{tpu_custom_call.1} parent=39 // pred_region
          %s321 = sand.u32 %s90, 1
          %s322 = scalar_lea.sflag [#allocation5], %s321
          %s323 = sand.u32 %s90, 1
          %s324 = scalar_lea.vmem [#allocation6], %s323
          %325 = dma.done %s322, 16
        $region44: #{tpu_custom_call.1} parent=39 // pred_fallthru
          _
      $region40: #{tpu_custom_call.1} parent=5 // pred_fallthru
        _
    $region6: #{tpu_custom_call.1} parent=1 // loop_footer
      %s19 = sadd.s32 1, %s15
    $region7: #{tpu_custom_call.1} parent=1 // loop_footer_branch
      %14 = sbr.rel target = $region3
    $region8: #{tpu_custom_call.1} parent=1 // loop_exit
      _
    %326 = vsyncpa [#allocation4], 1
    %s327 = scalar_lea.sflag [#allocation4], 1
    %328 = vsyncpa %s327, 1
    %329 = vsyncpa [#allocation5], 1
    %s330 = scalar_lea.sflag [#allocation5], 1
    %331 = vsyncpa %s330, 1

</llo_original>
